<compile_context>
chip_gen: v7x
topology: tpu7x:2x2x1
jax: 0.10.0
libtpu: 0.0.40
codegen_flags: <defaults>
</compile_context>

<pallas_src>
import jax
import jax.numpy as jnp
from jax.experimental import pallas as pl
from jax.experimental.pallas import tpu as pltpu

d_in = 1
d_out = 2
n = 50

LANES = 128  # f32 lane width; params slab is exactly one (8, 128) VMEM tile.

# Parameter-slab row layout (zero-padded everywhere else):
ROW_W1 = 0      # w1  (d_in=1, n)   in lanes [0, n)
ROW_B1 = 1      # b1  (1, n)        in lanes [0, n)
ROW_W2 = 2      # w2t (d_out, n)    rows 2..3, lanes [0, n)
ROW_B2 = 4      # b2  (1, d_out)    in lanes [0, d_out)


def mlp_kernel(x_ref, p_ref, o_ref):
    # ---- Layer 1: (B,1) x (1,n) -> broadcast multiply on the VPU (no MXU).
    # Full 128-lane row: lanes >= n hold zero weight/bias, so those hidden
    # units are sigmoid(0)=0.5 and get multiplied by zero-padded w2t lanes
    # below -> zero contribution.  All loads stay unmasked/full-lane.
    w1 = p_ref[ROW_W1:ROW_W1 + 1, :]                    # (1, 128)
    b1 = p_ref[ROW_B1:ROW_B1 + 1, :]                    # (1, 128)
    h = x_ref[...] * w1 + b1                            # (B, 128)

    # Sigmoid via tanh identity -> single EUP transcendental, no VPU divide.
    h = 0.5 * (jnp.tanh(0.5 * h) + 1.0)

    # ---- Layer 2: d_out = 2 -> per-column VPU multiply + XLU lane-sum,
    # b2 folded into the reduction, direct column stores (no concatenate).
    for k in range(d_out):
        w2_row = p_ref[ROW_W2 + k:ROW_W2 + k + 1, :]    # (1, 128)
        b2_k = p_ref[ROW_B2:ROW_B2 + 1, k:k + 1]        # (1, 1)
        col = jnp.sum(h * w2_row, axis=-1, keepdims=True) + b2_k  # (B, 1)
        o_ref[:, k:k + 1] = col.astype(o_ref.dtype)


def pack_params(w1, b1, w2t, b2):
    """Pack w1 (d_in,n), b1 (1,n), w2t (d_out,n), b2 (1,d_out) into one
    aligned (8, 128) f32 slab (single DMA, single VMEM tile)."""
    p = jnp.zeros((8, LANES), jnp.float32)
    p = p.at[ROW_W1, :n].set(w1.reshape(n))
    p = p.at[ROW_B1, :n].set(b1.reshape(n))
    p = p.at[ROW_W2:ROW_W2 + d_out, :n].set(w2t)
    p = p.at[ROW_B2, :d_out].set(b2.reshape(d_out))
    return p


def net_forward(x, params):
    B = x.shape[0]
    vmem = pl.BlockSpec(memory_space=pltpu.MemorySpace.VMEM)
    cost = pl.CostEstimate(
        flops=2 * B * n * (d_in + d_out),
        transcendentals=B * n,
        bytes_accessed=4 * (B * d_in + 8 * LANES + B * d_out),
    )
    # No grid: single invocation, x + packed-params fully VMEM resident.
    # For large B: grid over B (TB multiple of 8), dimension_semantics
    # ("parallel",) for v7x's two TensorCores, and a lane-dense output layout.
    return pl.pallas_call(
        mlp_kernel,
        out_shape=jax.ShapeDtypeStruct((B, d_out), jnp.float32),
        in_specs=[vmem, vmem],
        out_specs=vmem,
        cost_estimate=cost,
    )(x, params)


def init_params(key):
    # Deterministic init mimicking nn.Linear default:
    # U(-1/sqrt(fan_in), +1/sqrt(fan_in))
    k1, k2, k3, k4 = jax.random.split(key, 4)
    bound1 = 1.0 / jnp.sqrt(jnp.float32(d_in))
    bound2 = 1.0 / jnp.sqrt(jnp.float32(n))
    w1 = jax.random.uniform(k1, (d_in, n), jnp.float32, -bound1, bound1)
    b1 = jax.random.uniform(k2, (1, n), jnp.float32, -bound1, bound1)
    w2t = jax.random.uniform(k3, (d_out, n), jnp.float32, -bound2, bound2)
    b2 = jax.random.uniform(k4, (1, d_out), jnp.float32, -bound2, bound2)
    return w1, b1, w2t, b2


if __name__ == "__main__":
    key = jax.random.PRNGKey(0)
    kx, kp = jax.random.split(key)
    B = 8
    x = jax.random.normal(kx, (B, d_in), dtype=jnp.float32)
    w1, b1, w2t, b2 = init_params(kp)
    params = pack_params(w1, b1, w2t, b2)

    out = net_forward(x, params)
    out = jax.block_until_ready(out)

    # Reference check in plain JAX (PyTorch semantics: sigmoid(fc1) -> fc2).
    h_ref = jax.nn.sigmoid(x @ w1 + b1)
    y_ref = h_ref @ w2t.T + b2
    assert out.shape == (B, d_out)
    assert jnp.allclose(out, y_ref, atol=1e-5, rtol=1e-5)

    print("KERNEL_OK")
</pallas_src>

<mosaic_0001>
module attributes {stable_mosaic.version = 11 : i64} {
  func.func @mlp_kernel(%arg0: memref<8x1xf32, #tpu.memory_space<vmem>>, %arg1: memref<8x128xf32, #tpu.memory_space<vmem>>, %arg2: memref<8x2xf32, #tpu.memory_space<vmem>>) attributes {dimension_semantics = [], scalar_prefetch = 0 : i64, scratch_operands = 0 : i64, tpu.core_type = #tpu.core_type<tc>} {
    %c0 = arith.constant 0 : index
    %c0_0 = arith.constant 0 : index
    %0 = vector.load %arg1[%c0, %c0_0] : memref<8x128xf32, #tpu.memory_space<vmem>>, vector<1x128xf32>
    %c1 = arith.constant 1 : index
    %c0_1 = arith.constant 0 : index
    %1 = vector.load %arg1[%c1, %c0_1] : memref<8x128xf32, #tpu.memory_space<vmem>>, vector<1x128xf32>
    %c0_2 = arith.constant 0 : index
    %c0_3 = arith.constant 0 : index
    %2 = vector.load %arg0[%c0_2, %c0_3] : memref<8x1xf32, #tpu.memory_space<vmem>>, vector<8x1xf32>
    %3 = vector.broadcast %2 : vector<8x1xf32> to vector<8x128xf32>
    %4 = vector.broadcast %0 : vector<1x128xf32> to vector<8x128xf32>
    %5 = arith.mulf %3, %4 : vector<8x128xf32>
    %6 = vector.broadcast %1 : vector<1x128xf32> to vector<8x128xf32>
    %7 = arith.addf %5, %6 : vector<8x128xf32>
    %cst = arith.constant 5.000000e-01 : f32
    %8 = vector.broadcast %cst : f32 to vector<8x128xf32>
    %9 = arith.mulf %8, %7 : vector<8x128xf32>
    %10 = math.tanh %9 : vector<8x128xf32>
    %cst_4 = arith.constant 1.000000e+00 : f32
    %11 = vector.broadcast %cst_4 : f32 to vector<8x128xf32>
    %12 = arith.addf %10, %11 : vector<8x128xf32>
    %cst_5 = arith.constant 5.000000e-01 : f32
    %13 = vector.broadcast %cst_5 : f32 to vector<8x128xf32>
    %14 = arith.mulf %13, %12 : vector<8x128xf32>
    %c2 = arith.constant 2 : index
    %c0_6 = arith.constant 0 : index
    %15 = vector.load %arg1[%c2, %c0_6] : memref<8x128xf32, #tpu.memory_space<vmem>>, vector<1x128xf32>
    %c4 = arith.constant 4 : index
    %c0_7 = arith.constant 0 : index
    %16 = vector.load %arg1[%c4, %c0_7] : memref<8x128xf32, #tpu.memory_space<vmem>>, vector<1x1xf32>
    %17 = vector.broadcast %15 : vector<1x128xf32> to vector<8x128xf32>
    %18 = arith.mulf %14, %17 : vector<8x128xf32>
    %cst_8 = arith.constant dense<0.000000e+00> : vector<8xf32>
    %19 = vector.multi_reduction <add>, %18, %cst_8 [1] : vector<8x128xf32> to vector<8xf32>
    %20 = vector.shape_cast %19 : vector<8xf32> to vector<8x1xf32>
    %21 = vector.broadcast %16 : vector<1x1xf32> to vector<8x1xf32>
    %22 = arith.addf %20, %21 : vector<8x1xf32>
    %c0_9 = arith.constant 0 : index
    %c0_10 = arith.constant 0 : index
    %23 = vector.load %arg2[%c0_9, %c0_10] : memref<8x2xf32, #tpu.memory_space<vmem>>, vector<8x1xf32>
    tpu.vector_store %arg2[%c0_9, %c0_10], %22 {strides = array<i32>} : memref<8x2xf32, #tpu.memory_space<vmem>>, vector<8x1xf32>,
    %c3 = arith.constant 3 : index
    %c0_11 = arith.constant 0 : index
    %24 = vector.load %arg1[%c3, %c0_11] : memref<8x128xf32, #tpu.memory_space<vmem>>, vector<1x128xf32>
    %c4_12 = arith.constant 4 : index
    %c1_13 = arith.constant 1 : index
    %25 = vector.load %arg1[%c4_12, %c1_13] : memref<8x128xf32, #tpu.memory_space<vmem>>, vector<1x1xf32>
    %26 = vector.broadcast %24 : vector<1x128xf32> to vector<8x128xf32>
    %27 = arith.mulf %14, %26 : vector<8x128xf32>
    %cst_14 = arith.constant dense<0.000000e+00> : vector<8xf32>
    %28 = vector.multi_reduction <add>, %27, %cst_14 [1] : vector<8x128xf32> to vector<8xf32>
    %29 = vector.shape_cast %28 : vector<8xf32> to vector<8x1xf32>
    %30 = vector.broadcast %25 : vector<1x1xf32> to vector<8x1xf32>
    %31 = arith.addf %29, %30 : vector<8x1xf32>
    %c0_15 = arith.constant 0 : index
    %c1_16 = arith.constant 1 : index
    %32 = vector.load %arg2[%c0_15, %c1_16] : memref<8x2xf32, #tpu.memory_space<vmem>>, vector<8x1xf32>
    tpu.vector_store %arg2[%c0_15, %c1_16], %31 {strides = array<i32>} : memref<8x2xf32, #tpu.memory_space<vmem>>, vector<8x1xf32>,
    return
  }
}

</mosaic_0001>

<llo_original>
// kernel: tpu_custom_call.1
$region0: #{tpu_custom_call.1}
  #allocation0 [shape = 'u32[]', space=smem, size = 0x4, offset = 0x4, fixed_abs, tag = 'smem constant byte address 0x4 - core index']
  #allocation1 [shape = 'u32[144,128]{1,0:T(1,128)}', space=vmem, size = 0x12000, scoped, tag = 'internal scratch']
  %s0 = inlined_call_operand.vmem [shape: f32[8,1], index: 0, kind: input, shape index: {}]
  %s1 = inlined_call_operand.vmem [shape: f32[8,128], index: 1, kind: input, shape index: {}]
  %s2 = inlined_call_operand.vmem [shape: f32[8,2], index: 2, kind: output, shape index: {}]
  %s3 = sld [smem:[#allocation0]]
  $region18: #{tpu_custom_call.1} parent=0
    _
  %s5 = ssub.s32 1, %s3
  %s6 = scalar_select 0, %s5, %s3
  // Predicated region
  $region2: #{tpu_custom_call.1} parent=0 // pred_check
    _
  $region3: #{tpu_custom_call.1} parent=0 // pred_check_branch
    %8 = sbr.rel (0) target = $region5
  $region4: #{tpu_custom_call.1} parent=0 // pred_region
    _
  $region5: #{tpu_custom_call.1} parent=0 // pred_fallthru
    _
  // Predicated region
  $region6: #{tpu_custom_call.1} parent=0 // pred_check
    _
  $region7: #{tpu_custom_call.1} parent=0 // pred_check_branch
    %10 = sbr.rel (0) target = $region9
  $region8: #{tpu_custom_call.1} parent=0 // pred_region
    _
  $region9: #{tpu_custom_call.1} parent=0 // pred_fallthru
    _
  %v11 = vld [vmem:[%s1] sm:$0x1]
  %v12 = vld [vmem:[%s1 + $0x1] sm:$0x1]
  %v13 = vld [vmem:[%s0] sm:$0xff]
  %15 = vset.pattern.permute.xlu0 0
  %16 = vperm.xlu0 %15, %v13
  %v17 = vpop.permute.xlu0 %16
  %v19 = vlaneseq
  %v20 = vshrl.u32 %v19, 7
  %v21 = vsub.s32 0, %v20
  %v22 = vrot.slane %v11, %v21
  %v23 = vmul.f32 %v17, %v22
  %v24 = vlaneseq
  %v25 = vshrl.u32 %v24, 7
  %v26 = vsub.s32 0, %v25
  %v27 = vrot.slane %v12, %v26
  %v28 = vadd.f32 %v23, %v27
  %v29 = vmul.f32 %v28, 0.5
  %v30 = vtanh.pop %v29
  %v31 = vadd.f32 %v30, 1.0
  %v32 = vmul.f32 %v31, 0.5
  %v33 = vld [vmem:[%s1 + $0x2] sm:$0x1]
  %v34 = vld [vmem:[%s1 + $0x4] sm:$0x1]
  %v35 = vlaneseq
  %v36 = vshrl.u32 %v35, 7
  %v37 = vsub.s32 0, %v36
  %v38 = vrot.slane %v33, %v37
  %v39 = vmul.f32 %v32, %v38
  %40 = vadd.xlane.f32.xlu0 %v39
  %v41 = vpop.xlane.xlu0 %40
  %v42 = vlaneseq
  %v43 = vshrl.u32 %v42, 7
  %v44 = vsub.s32 0, %v43
  %v45 = vrot.slane %v34, %v44
  %v46 = vadd.f32 %v41, %v45
  %vm47 = vcmask 7168
  %48 = vst.msk [vmem:[%s2] sm:$0xff] %vm47, %v46
  %v49 = vld [vmem:[%s1 + $0x3] sm:$0x1]
  %v50 = vld [vmem:[%s1 + $0x4] sm:$0x1]
  %v51 = vlaneseq
  %v52 = vshrl.u32 %v51, 7
  %v53 = vsub.s32 0, %v52
  %v54 = vrot.slane %v49, %v53
  %v55 = vmul.f32 %v32, %v54
  %56 = vadd.xlane.f32.xlu0 %v55
  %v57 = vpop.xlane.xlu0 %56
  %v58 = vlaneseq
  %v59 = vshrl.u32 %v58, 7
  %v60 = vsub.s32 0, %v59
  %v61 = vrot.slane %v50, %v60
  %v62 = vadd.f32 %v57, %v61
  %vm63 = vcmask 15368
  %64 = vst.msk [vmem:[%s2] sm:$0xff] %vm63, %v62
  // Predicated region
  $region10: #{tpu_custom_call.1} parent=0 // pred_check
    _
  $region11: #{tpu_custom_call.1} parent=0 // pred_check_branch
    %66 = sbr.rel (0) target = $region13
  $region12: #{tpu_custom_call.1} parent=0 // pred_region
    _
  $region13: #{tpu_custom_call.1} parent=0 // pred_fallthru
    _
  // Predicated region
  $region14: #{tpu_custom_call.1} parent=0 // pred_check
    _
  $region15: #{tpu_custom_call.1} parent=0 // pred_check_branch
    %68 = sbr.rel (0) target = $region17
  $region16: #{tpu_custom_call.1} parent=0 // pred_region
    _
  $region17: #{tpu_custom_call.1} parent=0 // pred_fallthru
    _

</llo_original>
